<compile_context>
chip_gen: v6e
topology: v6e:2x2x1
jax: 0.10.0
libtpu: 0.0.40
codegen_flags: <defaults>
</compile_context>

<pallas_src>
import jax
import jax.numpy as jnp
from jax.experimental import pallas as pl
from jax.experimental.pallas import tpu as pltpu

NORM_EPS = 1e-12  # eps of torch.nn.functional.normalize


def _softplus(z):
    # Numerically stable softplus == per-element BCE-with-logits building block.
    return jnp.maximum(z, 0.0) + jnp.log(1.0 + jnp.exp(-jnp.abs(z)))


def clip_loss_kernel(s_ref, e_ref, en_ref, loss_ref,
                     ss_acc, ee_acc, enen_acc, se_acc, sen_acc):
    """One D-tile: accumulate per-row squared norms and matched / shifted dot
    products; on the last tile turn them into normalized cosine logits and the
    BCE-with-logits loss.

    s_ref, e_ref, en_ref : (B, dk) f32   speech, eeg, eeg shifted by one row
    loss_ref             : (1, 1)  f32   scalar loss output
    *_acc                : (B, 1)  f32   VMEM accumulators
    """
    d = pl.program_id(0)

    @pl.when(d == 0)
    def _init():
        ss_acc[...] = jnp.zeros_like(ss_acc)
        ee_acc[...] = jnp.zeros_like(ee_acc)
        enen_acc[...] = jnp.zeros_like(enen_acc)
        se_acc[...] = jnp.zeros_like(se_acc)
        sen_acc[...] = jnp.zeros_like(sen_acc)

    s = s_ref[...]
    e = e_ref[...]
    en = en_ref[...]

    ss_acc[...] += jnp.sum(s * s, axis=1, keepdims=True)      # ||speech_i||^2
    ee_acc[...] += jnp.sum(e * e, axis=1, keepdims=True)      # ||eeg_i||^2
    enen_acc[...] += jnp.sum(en * en, axis=1, keepdims=True)  # ||eeg_{i+1}||^2
    se_acc[...] += jnp.sum(s * e, axis=1, keepdims=True)      # <speech_i, eeg_i>
    sen_acc[...] += jnp.sum(s * en, axis=1, keepdims=True)    # <speech_i, eeg_{i+1}>

    @pl.when(d == pl.num_programs(0) - 1)
    def _finalize():
        inv_s = 1.0 / jnp.maximum(jnp.sqrt(ss_acc[...]), NORM_EPS)
        inv_e = 1.0 / jnp.maximum(jnp.sqrt(ee_acc[...]), NORM_EPS)
        inv_en = 1.0 / jnp.maximum(jnp.sqrt(enen_acc[...]), NORM_EPS)
        logit_match = se_acc[...] * inv_s * inv_e        # logits[i, i]
        logit_mismatch = sen_acc[...] * inv_s * inv_en   # logits[i, i+1]

        b = logit_match.shape[0]
        row = jax.lax.broadcasted_iota(jnp.int32, (b, 1), 0)
        valid = (row < (b - 1)).astype(jnp.float32)      # diag()[:-1] / offset-1 diag
        # target = 1 for matched pairs, target = 0 for mismatched pairs.
        per_row = valid * (_softplus(-logit_match) + _softplus(logit_mismatch))
        loss_ref[...] = jnp.sum(per_row, axis=0, keepdims=True) / (2.0 * (b - 1))


def _prep_features(feat):
    """Mirror of the module's transpose-if-(dim1>dim2) + flatten(start_dim=1)."""
    if feat.shape[1] > feat.shape[2]:
        feat = jnp.transpose(feat, (0, 2, 1))
    return feat.reshape(feat.shape[0], -1).astype(jnp.float32)


def clip_no_contrastive_forward(eeg, speech, ids=None):
    # TODO(synk): eegModel / speechModel are constructor-injected submodules whose
    # architecture is not given in the spec; they are treated as identity feature
    # extractors here (eeg / speech are already (B, C, T)-style feature maps).
    del ids  # unused by the reference forward as well
    eeg_features = _prep_features(eeg)
    speech_features = _prep_features(speech)
    assert eeg_features.shape == speech_features.shape, "feature dims must match"

    B, D = speech_features.shape
    # Lane-dense feature axis: zero-pad D up to a multiple of 128.
    Dp = ((D + 127) // 128) * 128
    if Dp != D:
        pad = ((0, 0), (0, Dp - D))
        eeg_features = jnp.pad(eeg_features, pad)
        speech_features = jnp.pad(speech_features, pad)
    # Row-shifted copy so logits[i, i+1] becomes a row-aligned dot product.
    eeg_next = jnp.roll(eeg_features, -1, axis=0)  # wrap-around row masked in-kernel

    # Tile the feature (reduction) axis over the grid.
    dk = Dp
    for cand in (512, 256, 128):
        if Dp % cand == 0:
            dk = cand
            break
    grid = (Dp // dk,)

    loss = pl.pallas_call(
        clip_loss_kernel,
        out_shape=jax.ShapeDtypeStruct((1, 1), jnp.float32),
        grid_spec=pltpu.PrefetchScalarGridSpec(
            num_scalar_prefetch=0,
            grid=grid,
            in_specs=[
                pl.BlockSpec((B, dk), lambda d: (0, d)),
                pl.BlockSpec((B, dk), lambda d: (0, d)),
                pl.BlockSpec((B, dk), lambda d: (0, d)),
            ],
            out_specs=pl.BlockSpec((1, 1), lambda d: (0, 0)),
            scratch_shapes=[pltpu.VMEM((B, 1), jnp.float32)] * 5,
        ),
        compiler_params=pltpu.CompilerParams(
            dimension_semantics=("arbitrary",)),  # reduction axis
    )(speech_features, eeg_features, eeg_next)[0, 0]

    return loss, loss, loss


def clip_no_contrastive_reference(eeg, speech):
    """Plain-JAX replica of the PyTorch forward (for verification)."""
    E = _prep_features(eeg)
    S = _prep_features(speech)
    E = E / jnp.maximum(jnp.linalg.norm(E, axis=1, keepdims=True), NORM_EPS)
    S = S / jnp.maximum(jnp.linalg.norm(S, axis=1, keepdims=True), NORM_EPS)
    logits = S @ E.T
    lm = jnp.diagonal(logits)[:-1]
    lmm = jnp.diagonal(logits, offset=1)
    x = jnp.stack([lm, lmm])
    t = jnp.stack([jnp.ones_like(lm), jnp.zeros_like(lmm)])
    # binary_cross_entropy_with_logits, reduction='mean'
    return jnp.mean(jnp.maximum(x, 0.0) - x * t + jnp.log(1.0 + jnp.exp(-jnp.abs(x))))


if __name__ == "__main__":
    key = jax.random.PRNGKey(0)
    k_eeg, k_speech = jax.random.split(key)
    B = 8
    # eegModel output stand-in: (B, C=4, T=32)  -> dim1 < dim2, no transpose branch.
    eeg = jax.random.normal(k_eeg, (B, 4, 32), dtype=jnp.float32)
    # speechModel output stand-in: (B, T=32, C=4) -> dim1 > dim2, exercises the transpose.
    speech = jax.random.normal(k_speech, (B, 32, 4), dtype=jnp.float32)
    ids = jnp.arange(B, dtype=jnp.int32)

    l0, l1, l2 = clip_no_contrastive_forward(eeg, speech, ids)
    l0 = jax.block_until_ready(l0)

    ref = clip_no_contrastive_reference(eeg, speech)
    assert jnp.allclose(l0, ref, atol=1e-5, rtol=1e-5), (float(l0), float(ref))
    assert jnp.allclose(l0, l1) and jnp.allclose(l0, l2)
    print("KERNEL_OK")
</pallas_src>

<mosaic_0001>
module attributes {stable_mosaic.version = 11 : i64} {
  func.func @clip_loss_kernel(%arg0: i32, %arg1: memref<8x128xf32, #tpu.memory_space<vmem>>, %arg2: memref<8x128xf32, #tpu.memory_space<vmem>>, %arg3: memref<8x128xf32, #tpu.memory_space<vmem>>, %arg4: memref<1x1xf32, #tpu.memory_space<vmem>>, %arg5: memref<8x1xf32, #tpu.memory_space<vmem>>, %arg6: memref<8x1xf32, #tpu.memory_space<vmem>>, %arg7: memref<8x1xf32, #tpu.memory_space<vmem>>, %arg8: memref<8x1xf32, #tpu.memory_space<vmem>>, %arg9: memref<8x1xf32, #tpu.memory_space<vmem>>) attributes {dimension_semantics = [#tpu.dimension_semantics<arbitrary>], iteration_bounds = array<i64: 1>, scalar_prefetch = 0 : i64, scratch_operands = 5 : i64, tpu.core_type = #tpu.core_type<tc>, window_params = [{transform_indices = @transform_0, window_bounds = array<i64: 8, 128>}, {transform_indices = @transform_1, window_bounds = array<i64: 8, 128>}, {transform_indices = @transform_2, window_bounds = array<i64: 8, 128>}, {pipeline_mode = #tpu.pipeline_mode<synchronous>, transform_indices = @transform_3, window_bounds = array<i64: 1, 1>}]} {
    %c0_i32 = arith.constant 0 : i32
    %0 = arith.cmpi eq, %arg0, %c0_i32 : i32
    %1 = arith.extui %0 : i1 to i32
    %c0_i32_0 = arith.constant 0 : i32
    %2 = arith.cmpi ne, %1, %c0_i32_0 : i32
    scf.if %2 {
      %cst_32 = arith.constant 0.000000e+00 : f32
      %39 = vector.broadcast %cst_32 : f32 to vector<8x1xf32>
      %c0_33 = arith.constant 0 : index
      %c0_34 = arith.constant 0 : index
      %40 = vector.load %arg5[%c0_33, %c0_34] : memref<8x1xf32, #tpu.memory_space<vmem>>, vector<8x1xf32>
      tpu.vector_store %arg5[%c0_33, %c0_34], %39 {strides = array<i32>} : memref<8x1xf32, #tpu.memory_space<vmem>>, vector<8x1xf32>,
      %cst_35 = arith.constant 0.000000e+00 : f32
      %41 = vector.broadcast %cst_35 : f32 to vector<8x1xf32>
      %c0_36 = arith.constant 0 : index
      %c0_37 = arith.constant 0 : index
      %42 = vector.load %arg6[%c0_36, %c0_37] : memref<8x1xf32, #tpu.memory_space<vmem>>, vector<8x1xf32>
      tpu.vector_store %arg6[%c0_36, %c0_37], %41 {strides = array<i32>} : memref<8x1xf32, #tpu.memory_space<vmem>>, vector<8x1xf32>,
      %cst_38 = arith.constant 0.000000e+00 : f32
      %43 = vector.broadcast %cst_38 : f32 to vector<8x1xf32>
      %c0_39 = arith.constant 0 : index
      %c0_40 = arith.constant 0 : index
      %44 = vector.load %arg7[%c0_39, %c0_40] : memref<8x1xf32, #tpu.memory_space<vmem>>, vector<8x1xf32>
      tpu.vector_store %arg7[%c0_39, %c0_40], %43 {strides = array<i32>} : memref<8x1xf32, #tpu.memory_space<vmem>>, vector<8x1xf32>,
      %cst_41 = arith.constant 0.000000e+00 : f32
      %45 = vector.broadcast %cst_41 : f32 to vector<8x1xf32>
      %c0_42 = arith.constant 0 : index
      %c0_43 = arith.constant 0 : index
      %46 = vector.load %arg8[%c0_42, %c0_43] : memref<8x1xf32, #tpu.memory_space<vmem>>, vector<8x1xf32>
      tpu.vector_store %arg8[%c0_42, %c0_43], %45 {strides = array<i32>} : memref<8x1xf32, #tpu.memory_space<vmem>>, vector<8x1xf32>,
      %cst_44 = arith.constant 0.000000e+00 : f32
      %47 = vector.broadcast %cst_44 : f32 to vector<8x1xf32>
      %c0_45 = arith.constant 0 : index
      %c0_46 = arith.constant 0 : index
      %48 = vector.load %arg9[%c0_45, %c0_46] : memref<8x1xf32, #tpu.memory_space<vmem>>, vector<8x1xf32>
      tpu.vector_store %arg9[%c0_45, %c0_46], %47 {strides = array<i32>} : memref<8x1xf32, #tpu.memory_space<vmem>>, vector<8x1xf32>,
    } else {
    }
    %c0 = arith.constant 0 : index
    %c0_1 = arith.constant 0 : index
    %3 = vector.load %arg1[%c0, %c0_1] : memref<8x128xf32, #tpu.memory_space<vmem>>, vector<8x128xf32>
    %c0_2 = arith.constant 0 : index
    %c0_3 = arith.constant 0 : index
    %4 = vector.load %arg2[%c0_2, %c0_3] : memref<8x128xf32, #tpu.memory_space<vmem>>, vector<8x128xf32>
    %c0_4 = arith.constant 0 : index
    %c0_5 = arith.constant 0 : index
    %5 = vector.load %arg3[%c0_4, %c0_5] : memref<8x128xf32, #tpu.memory_space<vmem>>, vector<8x128xf32>
    %c0_6 = arith.constant 0 : index
    %c0_7 = arith.constant 0 : index
    %6 = vector.load %arg5[%c0_6, %c0_7] : memref<8x1xf32, #tpu.memory_space<vmem>>, vector<8x1xf32>
    %7 = arith.mulf %3, %3 : vector<8x128xf32>
    %cst = arith.constant dense<0.000000e+00> : vector<8xf32>
    %8 = vector.multi_reduction <add>, %7, %cst [1] : vector<8x128xf32> to vector<8xf32>
    %9 = vector.shape_cast %8 : vector<8xf32> to vector<8x1xf32>
    %10 = arith.addf %6, %9 : vector<8x1xf32>
    %c0_8 = arith.constant 0 : index
    %c0_9 = arith.constant 0 : index
    %11 = vector.load %arg5[%c0_8, %c0_9] : memref<8x1xf32, #tpu.memory_space<vmem>>, vector<8x1xf32>
    tpu.vector_store %arg5[%c0_8, %c0_9], %10 {strides = array<i32>} : memref<8x1xf32, #tpu.memory_space<vmem>>, vector<8x1xf32>,
    %c0_10 = arith.constant 0 : index
    %c0_11 = arith.constant 0 : index
    %12 = vector.load %arg6[%c0_10, %c0_11] : memref<8x1xf32, #tpu.memory_space<vmem>>, vector<8x1xf32>
    %13 = arith.mulf %4, %4 : vector<8x128xf32>
    %cst_12 = arith.constant dense<0.000000e+00> : vector<8xf32>
    %14 = vector.multi_reduction <add>, %13, %cst_12 [1] : vector<8x128xf32> to vector<8xf32>
    %15 = vector.shape_cast %14 : vector<8xf32> to vector<8x1xf32>
    %16 = arith.addf %12, %15 : vector<8x1xf32>
    %c0_13 = arith.constant 0 : index
    %c0_14 = arith.constant 0 : index
    %17 = vector.load %arg6[%c0_13, %c0_14] : memref<8x1xf32, #tpu.memory_space<vmem>>, vector<8x1xf32>
    tpu.vector_store %arg6[%c0_13, %c0_14], %16 {strides = array<i32>} : memref<8x1xf32, #tpu.memory_space<vmem>>, vector<8x1xf32>,
    %c0_15 = arith.constant 0 : index
    %c0_16 = arith.constant 0 : index
    %18 = vector.load %arg7[%c0_15, %c0_16] : memref<8x1xf32, #tpu.memory_space<vmem>>, vector<8x1xf32>
    %19 = arith.mulf %5, %5 : vector<8x128xf32>
    %cst_17 = arith.constant dense<0.000000e+00> : vector<8xf32>
    %20 = vector.multi_reduction <add>, %19, %cst_17 [1] : vector<8x128xf32> to vector<8xf32>
    %21 = vector.shape_cast %20 : vector<8xf32> to vector<8x1xf32>
    %22 = arith.addf %18, %21 : vector<8x1xf32>
    %c0_18 = arith.constant 0 : index
    %c0_19 = arith.constant 0 : index
    %23 = vector.load %arg7[%c0_18, %c0_19] : memref<8x1xf32, #tpu.memory_space<vmem>>, vector<8x1xf32>
    tpu.vector_store %arg7[%c0_18, %c0_19], %22 {strides = array<i32>} : memref<8x1xf32, #tpu.memory_space<vmem>>, vector<8x1xf32>,
    %c0_20 = arith.constant 0 : index
    %c0_21 = arith.constant 0 : index
    %24 = vector.load %arg8[%c0_20, %c0_21] : memref<8x1xf32, #tpu.memory_space<vmem>>, vector<8x1xf32>
    %25 = arith.mulf %3, %4 : vector<8x128xf32>
    %cst_22 = arith.constant dense<0.000000e+00> : vector<8xf32>
    %26 = vector.multi_reduction <add>, %25, %cst_22 [1] : vector<8x128xf32> to vector<8xf32>
    %27 = vector.shape_cast %26 : vector<8xf32> to vector<8x1xf32>
    %28 = arith.addf %24, %27 : vector<8x1xf32>
    %c0_23 = arith.constant 0 : index
    %c0_24 = arith.constant 0 : index
    %29 = vector.load %arg8[%c0_23, %c0_24] : memref<8x1xf32, #tpu.memory_space<vmem>>, vector<8x1xf32>
    tpu.vector_store %arg8[%c0_23, %c0_24], %28 {strides = array<i32>} : memref<8x1xf32, #tpu.memory_space<vmem>>, vector<8x1xf32>,
    %c0_25 = arith.constant 0 : index
    %c0_26 = arith.constant 0 : index
    %30 = vector.load %arg9[%c0_25, %c0_26] : memref<8x1xf32, #tpu.memory_space<vmem>>, vector<8x1xf32>
    %31 = arith.mulf %3, %5 : vector<8x128xf32>
    %cst_27 = arith.constant dense<0.000000e+00> : vector<8xf32>
    %32 = vector.multi_reduction <add>, %31, %cst_27 [1] : vector<8x128xf32> to vector<8xf32>
    %33 = vector.shape_cast %32 : vector<8xf32> to vector<8x1xf32>
    %34 = arith.addf %30, %33 : vector<8x1xf32>
    %c0_28 = arith.constant 0 : index
    %c0_29 = arith.constant 0 : index
    %35 = vector.load %arg9[%c0_28, %c0_29] : memref<8x1xf32, #tpu.memory_space<vmem>>, vector<8x1xf32>
    tpu.vector_store %arg9[%c0_28, %c0_29], %34 {strides = array<i32>} : memref<8x1xf32, #tpu.memory_space<vmem>>, vector<8x1xf32>,
    %c0_i32_30 = arith.constant 0 : i32
    %36 = arith.cmpi eq, %arg0, %c0_i32_30 : i32
    %37 = arith.extui %36 : i1 to i32
    %c0_i32_31 = arith.constant 0 : i32
    %38 = arith.cmpi ne, %37, %c0_i32_31 : i32
    scf.if %38 {
      %c0_32 = arith.constant 0 : index
      %c0_33 = arith.constant 0 : index
      %39 = vector.load %arg5[%c0_32, %c0_33] : memref<8x1xf32, #tpu.memory_space<vmem>>, vector<8x1xf32>
      %40 = math.sqrt %39 : vector<8x1xf32>
      %cst_34 = arith.constant 9.99999996E-13 : f32
      %41 = vector.broadcast %cst_34 : f32 to vector<8x1xf32>
      %42 = arith.maximumf %40, %41 : vector<8x1xf32>
      %cst_35 = arith.constant 1.000000e+00 : f32
      %43 = vector.broadcast %cst_35 : f32 to vector<8x1xf32>
      %44 = arith.divf %43, %42 : vector<8x1xf32>
      %c0_36 = arith.constant 0 : index
      %c0_37 = arith.constant 0 : index
      %45 = vector.load %arg6[%c0_36, %c0_37] : memref<8x1xf32, #tpu.memory_space<vmem>>, vector<8x1xf32>
      %46 = math.sqrt %45 : vector<8x1xf32>
      %cst_38 = arith.constant 9.99999996E-13 : f32
      %47 = vector.broadcast %cst_38 : f32 to vector<8x1xf32>
      %48 = arith.maximumf %46, %47 : vector<8x1xf32>
      %cst_39 = arith.constant 1.000000e+00 : f32
      %49 = vector.broadcast %cst_39 : f32 to vector<8x1xf32>
      %50 = arith.divf %49, %48 : vector<8x1xf32>
      %c0_40 = arith.constant 0 : index
      %c0_41 = arith.constant 0 : index
      %51 = vector.load %arg7[%c0_40, %c0_41] : memref<8x1xf32, #tpu.memory_space<vmem>>, vector<8x1xf32>
      %52 = math.sqrt %51 : vector<8x1xf32>
      %cst_42 = arith.constant 9.99999996E-13 : f32
      %53 = vector.broadcast %cst_42 : f32 to vector<8x1xf32>
      %54 = arith.maximumf %52, %53 : vector<8x1xf32>
      %cst_43 = arith.constant 1.000000e+00 : f32
      %55 = vector.broadcast %cst_43 : f32 to vector<8x1xf32>
      %56 = arith.divf %55, %54 : vector<8x1xf32>
      %c0_44 = arith.constant 0 : index
      %c0_45 = arith.constant 0 : index
      %57 = vector.load %arg8[%c0_44, %c0_45] : memref<8x1xf32, #tpu.memory_space<vmem>>, vector<8x1xf32>
      %58 = arith.mulf %57, %44 : vector<8x1xf32>
      %59 = arith.mulf %58, %50 : vector<8x1xf32>
      %c0_46 = arith.constant 0 : index
      %c0_47 = arith.constant 0 : index
      %60 = vector.load %arg9[%c0_46, %c0_47] : memref<8x1xf32, #tpu.memory_space<vmem>>, vector<8x1xf32>
      %61 = arith.mulf %60, %44 : vector<8x1xf32>
      %62 = arith.mulf %61, %56 : vector<8x1xf32>
      %63 = tpu.iota {dimensions = array<i32: 0>} : vector<8x1xi32>
      %c7_i32 = arith.constant 7 : i32
      %64 = vector.broadcast %c7_i32 : i32 to vector<8x1xi32>
      %65 = arith.cmpi slt, %63, %64 : vector<8x1xi32>
      %66 = arith.extui %65 : vector<8x1xi1> to vector<8x1xi32>
      %67 = arith.sitofp %66 : vector<8x1xi32> to vector<8x1xf32>
      %cst_48 = arith.constant 0.000000e+00 : f32
      %68 = vector.broadcast %cst_48 : f32 to vector<8x1xf32>
      %69 = arith.subf %68, %59 : vector<8x1xf32>
      %cst_49 = arith.constant 0.000000e+00 : f32
      %70 = vector.broadcast %cst_49 : f32 to vector<8x1xf32>
      %71 = arith.maximumf %69, %70 : vector<8x1xf32>
      %72 = math.absf %69 : vector<8x1xf32>
      %cst_50 = arith.constant 0.000000e+00 : f32
      %73 = vector.broadcast %cst_50 : f32 to vector<8x1xf32>
      %74 = arith.subf %73, %72 : vector<8x1xf32>
      %75 = math.exp %74 : vector<8x1xf32>
      %cst_51 = arith.constant 1.000000e+00 : f32
      %76 = vector.broadcast %cst_51 : f32 to vector<8x1xf32>
      %77 = arith.addf %76, %75 : vector<8x1xf32>
      %78 = math.log %77 : vector<8x1xf32>
      %79 = arith.addf %71, %78 : vector<8x1xf32>
      %cst_52 = arith.constant 0.000000e+00 : f32
      %80 = vector.broadcast %cst_52 : f32 to vector<8x1xf32>
      %81 = arith.maximumf %62, %80 : vector<8x1xf32>
      %82 = math.absf %62 : vector<8x1xf32>
      %cst_53 = arith.constant 0.000000e+00 : f32
      %83 = vector.broadcast %cst_53 : f32 to vector<8x1xf32>
      %84 = arith.subf %83, %82 : vector<8x1xf32>
      %85 = math.exp %84 : vector<8x1xf32>
      %cst_54 = arith.constant 1.000000e+00 : f32
      %86 = vector.broadcast %cst_54 : f32 to vector<8x1xf32>
      %87 = arith.addf %86, %85 : vector<8x1xf32>
      %88 = math.log %87 : vector<8x1xf32>
      %89 = arith.addf %81, %88 : vector<8x1xf32>
      %90 = arith.addf %79, %89 : vector<8x1xf32>
      %91 = arith.mulf %67, %90 : vector<8x1xf32>
      %cst_55 = arith.constant dense<0.000000e+00> : vector<1xf32>
      %92 = vector.multi_reduction <add>, %91, %cst_55 [0] : vector<8x1xf32> to vector<1xf32>
      %93 = vector.shape_cast %92 : vector<1xf32> to vector<1x1xf32>
      %cst_56 = arith.constant 1.400000e+01 : f32
      %94 = vector.broadcast %cst_56 : f32 to vector<1x1xf32>
      %95 = arith.divf %93, %94 : vector<1x1xf32>
      %c0_57 = arith.constant 0 : index
      %c0_58 = arith.constant 0 : index
      %96 = vector.load %arg4[%c0_57, %c0_58] : memref<1x1xf32, #tpu.memory_space<vmem>>, vector<1x1xf32>
      tpu.vector_store %arg4[%c0_57, %c0_58], %95 {strides = array<i32>} : memref<1x1xf32, #tpu.memory_space<vmem>>, vector<1x1xf32>,
    } else {
    }
    return
  }
  func.func @transform_0(%arg0: i32) -> (i32, i32) {
    %c0_i32 = arith.constant 0 : i32
    %c0_i32_0 = arith.constant 0 : i32
    return %c0_i32, %arg0 : i32, i32
  }
  func.func @transform_1(%arg0: i32) -> (i32, i32) {
    %c0_i32 = arith.constant 0 : i32
    %c0_i32_0 = arith.constant 0 : i32
    return %c0_i32, %arg0 : i32, i32
  }
  func.func @transform_2(%arg0: i32) -> (i32, i32) {
    %c0_i32 = arith.constant 0 : i32
    %c0_i32_0 = arith.constant 0 : i32
    return %c0_i32, %arg0 : i32, i32
  }
  func.func @transform_3(%arg0: i32) -> (i32, i32) {
    %c0_i32 = arith.constant 0 : i32
    %c0_i32_0 = arith.constant 0 : i32
    %c0_i32_1 = arith.constant 0 : i32
    return %c0_i32, %c0_i32_0 : i32, i32
  }
}

</mosaic_0001>

<llo_original>
// kernel: tpu_custom_call.1
$region0: #{tpu_custom_call.1}
  #allocation0 [shape = 'u32[]', space=smem, size = 0x4, offset = 0x4, fixed_abs, tag = 'smem constant byte address 0x4 - core index']
  #allocation1 [shape = 'u32[144,128]{1,0:T(1,128)}', space=vmem, size = 0x12000, scoped, tag = 'internal scratch']
  #allocation2 [shape = 'f32[8,1]{1,0:T(8,128)}', space=vmem, size = 0x1000, scoped, tag = 'scratch operand']
  #allocation3 [shape = 'f32[8,1]{1,0:T(8,128)}', space=vmem, size = 0x1000, scoped, tag = 'scratch operand']
  #allocation4 [shape = 'f32[8,1]{1,0:T(8,128)}', space=vmem, size = 0x1000, scoped, tag = 'scratch operand']
  #allocation5 [shape = 'f32[8,1]{1,0:T(8,128)}', space=vmem, size = 0x1000, scoped, tag = 'scratch operand']
  #allocation6 [shape = 'f32[8,1]{1,0:T(8,128)}', space=vmem, size = 0x1000, scoped, tag = 'scratch operand']
  %s0 = inlined_call_operand.hbm [shape: f32[8,128], index: 0, kind: input, shape index: {}]
  %s1 = inlined_call_operand.hbm [shape: f32[8,128], index: 1, kind: input, shape index: {}]
  %s2 = inlined_call_operand.hbm [shape: f32[8,128], index: 2, kind: input, shape index: {}]
  %s3 = inlined_call_operand.hbm [shape: f32[1,1], index: 3, kind: output, shape index: {}]
  %s4 = sld [smem:[#allocation0]]
  $region42: #{tpu_custom_call.1} parent=0
    _
  %s6 = ssub.s32 1, %s4
  %s7 = scalar_select 0, %s6, %s4
  $region1: #{tpu_custom_call.1} parent=0
    #allocation7 [shape = 'u8[4096]{0}', space=vmem, size = 0x1000, scoped, tag = 'input window, operand 0, single buffered']
    #allocation8 [shape = 's32[1]{0}', space=sflag, size = 0x4, scoped, tag = 'scoped memory for tpu_custom_call.1']
    #allocation9 [shape = 's32[1]{0}', space=sflag, size = 0x4, scoped, tag = 'scoped memory for tpu_custom_call.1']
    #allocation10 [shape = 'u8[4096]{0}', space=vmem, size = 0x1000, scoped, tag = 'input window, operand 1, single buffered']
    #allocation11 [shape = 's32[1]{0}', space=sflag, size = 0x4, scoped, tag = 'scoped memory for tpu_custom_call.1']
    #allocation12 [shape = 'u8[4096]{0}', space=vmem, size = 0x1000, scoped, tag = 'input window, operand 2, single buffered']
    #allocation13 [shape = 'u8[512]{0}', space=vmem, size = 0x400, scoped, tag = 'output window, operand 0, single buffered']
    %8 = vsyncpa [#allocation8], 0
    %9 = vsyncpa [#allocation11], 0
    %10 = vsyncpa [#allocation9], 0
    // Predicated region
    $region2: #{tpu_custom_call.1} parent=1 // pred_check
      _
    $region3: #{tpu_custom_call.1} parent=1 // pred_check_branch
      %12 = sbr.rel (0) target = $region5
    $region4: #{tpu_custom_call.1} parent=1 // pred_region
      %s14 = ssub.s32 128, 128
      %15 = vsyncadd [#allocation8], %s14
      %s17 = sshll.u32 [#allocation7], 4
      %s18 = int_to_ptr.vmem [resolvable:$true] %s17
      %20 = dma.hbm_to_vmem [thread:$0]  %s0, 128, %s18, [#allocation8]
    $region5: #{tpu_custom_call.1} parent=1 // pred_fallthru
      _
    // Predicated region
    $region6: #{tpu_custom_call.1} parent=1 // pred_check
      _
    $region7: #{tpu_custom_call.1} parent=1 // pred_check_branch
      %22 = sbr.rel (0) target = $region9
    $region8: #{tpu_custom_call.1} parent=1 // pred_region
      %s24 = ssub.s32 128, 128
      %25 = vsyncadd [#allocation11], %s24
      %s27 = sshll.u32 [#allocation10], 4
      %s28 = int_to_ptr.vmem [resolvable:$true] %s27
      %30 = dma.hbm_to_vmem [thread:$0]  %s1, 128, %s28, [#allocation11]
    $region9: #{tpu_custom_call.1} parent=1 // pred_fallthru
      _
    // Predicated region
    $region10: #{tpu_custom_call.1} parent=1 // pred_check
      _
    $region11: #{tpu_custom_call.1} parent=1 // pred_check_branch
      %32 = sbr.rel (0) target = $region13
    $region12: #{tpu_custom_call.1} parent=1 // pred_region
      %s34 = ssub.s32 128, 128
      %35 = vsyncadd [#allocation11], %s34
      %s37 = sshll.u32 [#allocation12], 4
      %s38 = int_to_ptr.vmem [resolvable:$true] %s37
      %40 = dma.hbm_to_vmem [thread:$0]  %s2, 128, %s38, [#allocation11]
    $region13: #{tpu_custom_call.1} parent=1 // pred_fallthru
      _
    // Predicated region
    $region14: #{tpu_custom_call.1} parent=1 // pred_check
      _
    $region15: #{tpu_custom_call.1} parent=1 // pred_check_branch
      %42 = sbr.rel (0) target = $region17
    $region16: #{tpu_custom_call.1} parent=1 // pred_region
      %43 = dma.done [#allocation8], 128
    $region17: #{tpu_custom_call.1} parent=1 // pred_fallthru
      _
    // Predicated region
    $region18: #{tpu_custom_call.1} parent=1 // pred_check
      _
    $region19: #{tpu_custom_call.1} parent=1 // pred_check_branch
      %45 = sbr.rel (0) target = $region21
    $region20: #{tpu_custom_call.1} parent=1 // pred_region
      %46 = dma.done [#allocation11], 128
    $region21: #{tpu_custom_call.1} parent=1 // pred_fallthru
      _
    // Predicated region
    $region22: #{tpu_custom_call.1} parent=1 // pred_check
      _
    $region23: #{tpu_custom_call.1} parent=1 // pred_check_branch
      %48 = sbr.rel (0) target = $region25
    $region24: #{tpu_custom_call.1} parent=1 // pred_region
      %49 = dma.done [#allocation11], 128
    $region25: #{tpu_custom_call.1} parent=1 // pred_fallthru
      _
    %p50 = scmp.eq.s32.totalorder 0, 0
    // Predicated region
    $region26: #{tpu_custom_call.1} parent=1 // pred_check
      %p51 = pneg %p50
    $region27: #{tpu_custom_call.1} parent=1 // pred_check_branch
      %53 = sbr.rel (%p51) target = $region29
    $region28: #{tpu_custom_call.1} parent=1 // pred_region
      %vm54 = vcmask 7168
      %55 = vst.msk [vmem:[#allocation2] sm:$0xff] %vm54, 0.0
      %56 = vst.msk [vmem:[#allocation3] sm:$0xff] %vm54, 0.0
      %57 = vst.msk [vmem:[#allocation4] sm:$0xff] %vm54, 0.0
      %58 = vst.msk [vmem:[#allocation5] sm:$0xff] %vm54, 0.0
      %59 = vst.msk [vmem:[#allocation6] sm:$0xff] %vm54, 0.0
    $region29: #{tpu_custom_call.1} parent=1 // pred_fallthru
      _
    %v60 = vld [vmem:[#allocation7] sm:$0xff]
    %v61 = vld [vmem:[#allocation10] sm:$0xff]
    %v62 = vld [vmem:[#allocation12] sm:$0xff]
    %v63 = vld [vmem:[#allocation2] sm:$0xff]
    %v64 = vmul.f32 %v60, %v60
    %65 = vadd.xlane.f32.xlu0 %v64
    %v66 = vpop.xlane.xlu0 %65
    %v67 = vadd.f32 %v63, %v66
    %vm68 = vcmask 7168
    %69 = vst.msk [vmem:[#allocation2] sm:$0xff] %vm68, %v67
    %v70 = vld [vmem:[#allocation3] sm:$0xff]
    %v71 = vmul.f32 %v61, %v61
    %72 = vadd.xlane.f32.xlu0 %v71
    %v73 = vpop.xlane.xlu0 %72
    %v74 = vadd.f32 %v70, %v73
    %75 = vst.msk [vmem:[#allocation3] sm:$0xff] %vm68, %v74
    %v76 = vld [vmem:[#allocation4] sm:$0xff]
    %v77 = vmul.f32 %v62, %v62
    %78 = vadd.xlane.f32.xlu0 %v77
    %v79 = vpop.xlane.xlu0 %78
    %v80 = vadd.f32 %v76, %v79
    %81 = vst.msk [vmem:[#allocation4] sm:$0xff] %vm68, %v80
    %v82 = vld [vmem:[#allocation5] sm:$0xff]
    %v83 = vmul.f32 %v60, %v61
    %84 = vadd.xlane.f32.xlu0 %v83
    %v85 = vpop.xlane.xlu0 %84
    %v86 = vadd.f32 %v82, %v85
    %87 = vst.msk [vmem:[#allocation5] sm:$0xff] %vm68, %v86
    %v88 = vld [vmem:[#allocation6] sm:$0xff]
    %v89 = vmul.f32 %v60, %v62
    %90 = vadd.xlane.f32.xlu0 %v89
    %v91 = vpop.xlane.xlu0 %90
    %v92 = vadd.f32 %v88, %v91
    %93 = vst.msk [vmem:[#allocation6] sm:$0xff] %vm68, %v92
    // Predicated region
    $region30: #{tpu_custom_call.1} parent=1 // pred_check
      %p94 = pneg %p50
    $region31: #{tpu_custom_call.1} parent=1 // pred_check_branch
      %96 = sbr.rel (%p94) target = $region33
    $region32: #{tpu_custom_call.1} parent=1 // pred_region
      %v97 = vld [vmem:[#allocation2] sm:$0xff]
      %v98 = vrsqrt.pop %v97
      %v99 = vmul.f32 %v97, %v98
      %vm100 = vcmp.eq.f32.partialorder %v97, inf
      %v101 = vsel %vm100, %v97, %v99
      %vm102 = vcmp.eq.f32.partialorder %v97, 0.0
      %v103 = vand.u32 %v97, 2147483648
      %v104 = vsel %vm102, %v103, %v101
      %v105 = vmax.f32 %v104, 1e-12
      %v106 = vrcp.pop %v105
      %v107 = vmul.f32 1.0, %v106
      %v108 = vld [vmem:[#allocation3] sm:$0xff]
      %v109 = vrsqrt.pop %v108
      %v110 = vmul.f32 %v108, %v109
      %vm111 = vcmp.eq.f32.partialorder %v108, inf
      %v112 = vsel %vm111, %v108, %v110
      %vm113 = vcmp.eq.f32.partialorder %v108, 0.0
      %v114 = vand.u32 %v108, 2147483648
      %v115 = vsel %vm113, %v114, %v112
      %v116 = vmax.f32 %v115, 1e-12
      %v117 = vrcp.pop %v116
      %v118 = vmul.f32 1.0, %v117
      %v119 = vld [vmem:[#allocation4] sm:$0xff]
      %v120 = vrsqrt.pop %v119
      %v121 = vmul.f32 %v119, %v120
      %vm122 = vcmp.eq.f32.partialorder %v119, inf
      %v123 = vsel %vm122, %v119, %v121
      %vm124 = vcmp.eq.f32.partialorder %v119, 0.0
      %v125 = vand.u32 %v119, 2147483648
      %v126 = vsel %vm124, %v125, %v123
      %v127 = vmax.f32 %v126, 1e-12
      %v128 = vrcp.pop %v127
      %v129 = vmul.f32 1.0, %v128
      %v130 = vld [vmem:[#allocation5] sm:$0xff]
      %v131 = vmul.f32 %v130, %v107
      %v132 = vmul.f32 %v131, %v118
      %v133 = vld [vmem:[#allocation6] sm:$0xff]
      %v134 = vmul.f32 %v133, %v107
      %v135 = vmul.f32 %v134, %v129
      %v136 = vlaneseq
      %v137 = vshrl.u32 %v136, 7
      %vm138 = vcmp.lt.s32.totalorder %v137, 7
      %v139 = vsel %vm138, 1, 0
      %v140 = vcvt.s32.f32 %v139
      %v141 = vsub.f32 0.0, %v132
      %v142 = vmax.f32 %v141, 0.0
      %v143 = vand.u32 2147483647, %v141
      %v144 = vsub.f32 0.0, %v143
      %v145 = vmul.f32 %v144, 1.442695
      %v146 = vpow.pop %v145
      %v147 = vadd.f32 %v146, 1.0
      %v148 = vlog2.pop %v147
      %v149 = vmul.f32 %v148, 0.6931472
      %v150 = vadd.f32 %v142, %v149
      %v151 = vmax.f32 %v135, 0.0
      %v152 = vand.u32 2147483647, %v135
      %v153 = vsub.f32 0.0, %v152
      %v154 = vmul.f32 %v153, 1.442695
      %v155 = vpow.pop %v154
      %v156 = vadd.f32 %v155, 1.0
      %v157 = vlog2.pop %v156
      %v158 = vmul.f32 %v157, 0.6931472
      %v159 = vadd.f32 %v151, %v158
      %v160 = vadd.f32 %v150, %v159
      %v161 = vmul.f32 %v140, %v160
      %v162 = vsel %vm68, %v161, 0.0
      %v163 = vrot.slane %v162, 4
      %v164 = vadd.f32 %v162, %v163
      %v165 = vrot.slane %v164, 2
      %v166 = vadd.f32 %v164, %v165
      %v167 = vrot.slane %v166, 1
      %v168 = vadd.f32 %v166, %v167
      %v169 = vrcp.pop 14.0
      %v170 = vmul.f32 %v168, %v169
      %vm171 = vcmask 0
      %172 = vst.msk [vmem:[#allocation13] sm:$0x1] %vm171, %v170
    $region33: #{tpu_custom_call.1} parent=1 // pred_fallthru
      _
    // Predicated region
    $region34: #{tpu_custom_call.1} parent=1 // pred_check
      _
    $region35: #{tpu_custom_call.1} parent=1 // pred_check_branch
      %174 = sbr.rel (0) target = $region37
    $region36: #{tpu_custom_call.1} parent=1 // pred_region
      %s176 = ssub.s32 16, 16
      %177 = vsyncadd [#allocation9], %s176
      %s179 = sshll.u32 [#allocation13], 4
      %s180 = int_to_ptr.vmem [resolvable:$true] %s179
      %182 = dma.vmem_to_hbm [thread:$0]  %s180, 16, %s3, [#allocation9]
    $region37: #{tpu_custom_call.1} parent=1 // pred_fallthru
      _
    // Predicated region
    $region38: #{tpu_custom_call.1} parent=1 // pred_check
      _
    $region39: #{tpu_custom_call.1} parent=1 // pred_check_branch
      %184 = sbr.rel (0) target = $region41
    $region40: #{tpu_custom_call.1} parent=1 // pred_region
      %185 = dma.done [#allocation9], 16
    $region41: #{tpu_custom_call.1} parent=1 // pred_fallthru
      _
    %186 = vsyncpa [#allocation8], 1
    %187 = vsyncpa [#allocation11], 1
    %188 = vsyncpa [#allocation9], 1

</llo_original>
